<compile_context>
chip_gen: v6e
topology: v6e:2x2x1
jax: 0.10.0
libtpu: 0.0.40
codegen_flags: <defaults>
</compile_context>

<pallas_src>
import functools

import numpy as np
import jax
import jax.numpy as jnp
from jax import lax
from jax.experimental import pallas as pl
from jax.experimental.pallas import tpu as pltpu


_BAND_MIN_C = 128  # switch from dense W@x^2 to the banded shifted-sum path


def _round_up(x: int, m: int) -> int:
    return ((x + m - 1) // m) * m


def build_window_matrix(channels: int, size: int, alpha: float) -> np.ndarray:
    """Simulate torch's channel loop: scale[c] = k + sum_j W[c, j] * x[j]^2.

    alpha/size is folded into W so the kernel only computes `acc + k`.
    This is the single source of truth for the (asymmetric) window semantics.
    """
    pre_pad = int((size - 1) / 2 + 1)
    pre_pad_crop = channels if pre_pad > channels else pre_pad
    W = np.zeros((channels, channels), dtype=np.float32)
    W[0, :pre_pad_crop] = 1.0
    for c in range(1, channels):
        W[c] = W[c - 1]
        if c < channels - pre_pad + 1:
            W[c, c + pre_pad - 1] += 1.0
        if c > pre_pad:
            W[c, c - pre_pad] -= 1.0
    return W * (alpha / size)


def _band_coefficients(win: np.ndarray):
    """Decompose W into its diagonals.

    Returns (diags, coef) with coef[t, i, 0] = W[i, i + diags[t]] so that
    (W @ sq)[i] == sum_t coef[t, i] * sq[i + diags[t]]  (zero out of range).
    Each W row is a contiguous clamped band, so len(diags) ~ size.
    """
    c = win.shape[0]
    ii, jj = np.nonzero(win)
    diags = sorted({int(j - i) for i, j in zip(ii, jj)})
    dpos = {d: t for t, d in enumerate(diags)}
    coef = np.zeros((max(len(diags), 1), c, 1), dtype=np.float32)
    for i, j in zip(ii, jj):
        coef[dpos[int(j - i)], int(i), 0] = win[i, j]
    return diags, coef


def _scale_to_out(x, acc, beta, k):
    scale = acc + k
    if beta == 0.75:
        # scale**-0.75 = rsqrt(scale) * sqrt(rsqrt(scale)): EUP ops, avoids
        # the exp(-beta*log(scale)) chained-transcendental path.
        t = lax.rsqrt(scale)
        return x * (t * lax.sqrt(t))
    return x * scale ** (-beta)


def _lrn_dense_kernel(w_ref, x_ref, o_ref, *, beta, k, nb, c):
    """Small-C path: scale = W @ x^2 + k; out = x * scale^-beta.

    The channel block is padded up to the dtype sublane packing; W's padded
    rows/cols are zero and padded rows of x are explicitly zeroed (otherwise
    0 * garbage from the partial channel block could poison the matmul).
    """
    w = w_ref[...]                                    # (cs, cs) f32
    cs, t = x_ref.shape[-2], x_ref.shape[-1]
    valid = None
    if cs != c:
        row = lax.broadcasted_iota(jnp.int32, (cs, t), 0)
        valid = row < c
    for b in range(nb):                               # nb <= 8: bounded unroll
        x = x_ref[b].astype(jnp.float32)
        if valid is not None:
            x = jnp.where(valid, x, 0.0)
        acc = jnp.dot(w, x * x, preferred_element_type=jnp.float32)
        o_ref[b] = _scale_to_out(x, acc, beta, k).astype(o_ref.dtype)


def _lrn_band_kernel(coef_ref, x_ref, o_ref, pad_ref, *, diags, halo, c,
                     beta, k, nb):
    """Large-C path: acc[ch] = sum_d coef[d, ch] * sq[ch + d].

    x^2 is staged in a zero-haloed VMEM scratch so the shifted windows are
    plain static sublane slices; no MXU work, stays HBM-bound for any C.
    """
    t = x_ref.shape[-1]
    rows = pad_ref.shape[0]
    lo, hi = halo, halo + c
    if lo > 0:                                        # halos stay zero all step
        pad_ref[0:lo, :] = jnp.zeros((lo, t), jnp.float32)
    if rows > hi:
        pad_ref[hi:rows, :] = jnp.zeros((rows - hi, t), jnp.float32)
    for b in range(nb):                               # nb <= 8: bounded unroll
        x = x_ref[b].astype(jnp.float32)
        pad_ref[lo:hi, :] = x * x
        acc = jnp.zeros((c, t), jnp.float32)
        for di, d in enumerate(diags):
            acc = acc + coef_ref[di] * pad_ref[lo + d:lo + d + c, :]
        o_ref[b] = _scale_to_out(x, acc, beta, k).astype(o_ref.dtype)


def _vmem_budget():
    """(planning budget, vmem_limit_bytes) — generation aware."""
    try:
        cap = pltpu.get_tpu_info().vmem_capacity_bytes
    except Exception:
        cap = 64 * 1024 * 1024                       # assume smallest (v7x-class)
    if cap >= 96 * 1024 * 1024:                      # v5e / v6e: 128 MiB physical
        return 28 * 1024 * 1024, 48 * 1024 * 1024
    return 16 * 1024 * 1024, 32 * 1024 * 1024        # v7x-class: 64 MiB physical


def _choose_tiles(n, c, hw, dtype, scratch_rows):
    """Pick (tile_hw, n_hw_tiles, nb, vmem_limit) under the VMEM budget."""
    itemsize = jnp.dtype(dtype).itemsize
    # dtype-dependent sublane packing (f32:8, bf16:16, int8/fp8:32) for
    # VMEM accounting.
    c_sub = _round_up(c, 8 * max(1, 4 // itemsize))
    budget, vmem_limit = _vmem_budget()
    avail = budget - (1 << 20)                       # reserve for W/coef/misc
    per_lane_io = 4 * c_sub * itemsize               # in+out, double-buffered
    per_lane_tmp = 6 * c_sub * 4 + scratch_rows * 4  # f32 temporaries + scratch

    max_tile = avail // (per_lane_io + per_lane_tmp)
    max_tile = max(128, (max_tile // 128) * 128)
    max_tile = min(max_tile, 32768)

    if hw <= max_tile:
        tile_hw, n_hw = hw, 1                        # full-dim spatial block
    else:
        tile_hw = max_tile                           # multiple of 128;
        n_hw = -(-hw // tile_hw)                     # partial last tile is fine

    nb = 1
    if n_hw == 1 and n > 1:
        cap_mem = (avail - tile_hw * per_lane_tmp) // max(1, tile_hw * per_lane_io)
        # cap <= 8 (bounded unroll) and <= n//2 (>= 2 parallel grid steps).
        cap = max(1, min(int(cap_mem), 8, n // 2))
        for d in range(cap, 0, -1):
            if n % d == 0:
                nb = d
                break

    # v7x megacore: avoid a 1-step grid when the spatial extent can be split.
    if (n // nb) * n_hw == 1 and hw >= 256:
        tile_hw = _round_up(-(-hw // 2), 128)
        n_hw = -(-hw // tile_hw)

    return tile_hw, n_hw, nb, vmem_limit


def cross_map_lrn2d(x, size, alpha=1e-4, beta=0.75, k=1.0):
    """Forward pass of CrossMapLRN2d.  x: (N, C, H, W)."""
    assert x.ndim == 4
    n, c, h, w = x.shape
    hw = h * w
    itemsize = jnp.dtype(x.dtype).itemsize

    win = build_window_matrix(c, size, float(alpha))
    diags, coef = _band_coefficients(win)
    use_band = c >= _BAND_MIN_C and 0 < len(diags) <= max(8, c // 8)

    if use_band:
        halo_lo = max(0, -min(diags))
        halo_hi = max(0, max(diags))
        halo = _round_up(halo_lo, 8) if halo_lo > 0 else 0
        rows = _round_up(halo + c + halo_hi, 8)
        cs = c                                       # no channel alignment needed
    else:
        halo = 0
        rows = 0
        cs = _round_up(c, 8 * max(1, 4 // itemsize))  # dtype sublane packing

    tile_hw, n_hw, nb, vmem_limit = _choose_tiles(n, c, hw, x.dtype, rows)
    grid = (n // nb, n_hw)

    x3 = x.reshape(n, c, hw)                         # free: no pad/slice HBM pass
    x_spec = pl.BlockSpec((nb, cs, tile_hw), lambda i, j: (i, 0, j))
    o_spec = pl.BlockSpec((nb, cs, tile_hw), lambda i, j: (i, 0, j))
    out_shape = jax.ShapeDtypeStruct((n, c, hw), x.dtype)

    elems = n * c * hw
    inner = 2 * len(diags) if use_band else 2 * cs
    cost = pl.CostEstimate(
        flops=int((inner + 6) * elems),
        transcendentals=int(2 * elems),
        bytes_accessed=int(2 * elems * itemsize),
    )
    cparams = pltpu.CompilerParams(
        dimension_semantics=("parallel", "parallel"),
        vmem_limit_bytes=int(vmem_limit),
    )

    # TODO(synk): sweep pipeline_mode=pl.Buffered(3) on the x spec if profiling
    # ever shows exposed DMA on very small per-step compute.
    if use_band:
        kernel = functools.partial(
            _lrn_band_kernel, diags=tuple(diags), halo=int(halo), c=int(c),
            beta=float(beta), k=float(k), nb=int(nb))
        out = pl.pallas_call(
            kernel,
            out_shape=out_shape,
            grid_spec=pltpu.PrefetchScalarGridSpec(
                num_scalar_prefetch=0,
                grid=grid,
                in_specs=[
                    pl.BlockSpec(coef.shape, lambda i, j: (0, 0, 0)),
                    x_spec,
                ],
                out_specs=o_spec,
                scratch_shapes=[pltpu.VMEM((rows, tile_hw), jnp.float32)],
            ),
            compiler_params=cparams,
            cost_estimate=cost,
        )(jnp.asarray(coef), x3)
    else:
        w_pad = np.zeros((cs, cs), dtype=np.float32)
        w_pad[:c, :c] = win
        kernel = functools.partial(
            _lrn_dense_kernel, beta=float(beta), k=float(k), nb=int(nb), c=int(c))
        out = pl.pallas_call(
            kernel,
            out_shape=out_shape,
            grid_spec=pltpu.PrefetchScalarGridSpec(
                num_scalar_prefetch=0,
                grid=grid,
                in_specs=[
                    pl.BlockSpec((cs, cs), lambda i, j: (0, 0)),
                    x_spec,
                ],
                out_specs=o_spec,
            ),
            compiler_params=cparams,
            cost_estimate=cost,
        )(jnp.asarray(w_pad), x3)

    return out.reshape(n, c, h, w)


def cross_map_lrn2d_ref(x, size, alpha=1e-4, beta=0.75, k=1.0):
    """Pure-JAX reference mirroring the torch channel-loop semantics."""
    n, c, h, w = x.shape
    win = jnp.asarray(build_window_matrix(c, size, float(alpha)))
    sq = x.astype(jnp.float32) ** 2
    acc = jnp.einsum("ij,njhw->nihw", win, sq)
    scale = acc + k
    return (x.astype(jnp.float32) * scale ** (-beta)).astype(x.dtype)


if __name__ == "__main__":
    alpha, beta, k = 1e-4, 0.75, 1.0

    # Small shape from the module spec (dense matmul path, C=4, size=3).
    x = jax.random.normal(jax.random.PRNGKey(0), (2, 4, 16, 16), dtype=jnp.float32)
    out = jax.block_until_ready(cross_map_lrn2d(x, 3, alpha, beta, k))
    ref = cross_map_lrn2d_ref(x, 3, alpha, beta, k)
    np.testing.assert_allclose(np.asarray(out), np.asarray(ref),
                               rtol=1e-5, atol=1e-5)

    # Larger channel count exercises the banded shifted-sum path (C=128, size=5).
    x2 = jax.random.normal(jax.random.PRNGKey(0), (2, 128, 16, 16),
                           dtype=jnp.float32)
    out2 = jax.block_until_ready(cross_map_lrn2d(x2, 5, alpha, beta, k))
    ref2 = cross_map_lrn2d_ref(x2, 5, alpha, beta, k)
    np.testing.assert_allclose(np.asarray(out2), np.asarray(ref2),
                               rtol=1e-5, atol=1e-5)

    print("KERNEL_OK")
</pallas_src>

<mosaic_0001>
module attributes {stable_mosaic.version = 11 : i64} {
  func.func @_lrn_dense_kernel(%arg0: i32, %arg1: i32, %arg2: memref<8x8xf32, #tpu.memory_space<vmem>>, %arg3: memref<1x8x256xf32, #tpu.memory_space<vmem>>, %arg4: memref<1x8x256xf32, #tpu.memory_space<vmem>>) attributes {dimension_semantics = [#tpu.dimension_semantics<parallel>, #tpu.dimension_semantics<parallel>], iteration_bounds = array<i64: 2, 1>, scalar_prefetch = 0 : i64, scratch_operands = 0 : i64, tpu.core_type = #tpu.core_type<tc>, window_params = [{pipeline_mode = #tpu.pipeline_mode<synchronous>, transform_indices = @transform_0, window_bounds = array<i64: 8, 8>}, {transform_indices = @transform_1, window_bounds = array<i64: 1, 8, 256>}, {transform_indices = @transform_2, window_bounds = array<i64: 1, 8, 256>}]} {
    %c0 = arith.constant 0 : index
    %c0_0 = arith.constant 0 : index
    %0 = vector.load %arg2[%c0, %c0_0] : memref<8x8xf32, #tpu.memory_space<vmem>>, vector<8x8xf32>
    %1 = tpu.iota {dimensions = array<i32: 0>} : vector<8x256xi32>
    %c4_i32 = arith.constant 4 : i32
    %2 = vector.broadcast %c4_i32 : i32 to vector<8x256xi32>
    %3 = arith.cmpi slt, %1, %2 : vector<8x256xi32>
    %c0_1 = arith.constant 0 : index
    %c0_2 = arith.constant 0 : index
    %c0_3 = arith.constant 0 : index
    %4 = vector.load %arg3[%c0_1, %c0_2, %c0_3] : memref<1x8x256xf32, #tpu.memory_space<vmem>>, vector<1x8x256xf32>
    %5 = vector.shape_cast %4 : vector<1x8x256xf32> to vector<8x256xf32>
    %cst = arith.constant 0.000000e+00 : f32
    %6 = vector.broadcast %cst : f32 to vector<8x256xf32>
    %7 = arith.select %3, %5, %6 : vector<8x256xi1>, vector<8x256xf32>
    %8 = arith.mulf %7, %7 : vector<8x256xf32>
    %cst_4 = arith.constant dense<0.000000e+00> : vector<8x256xf32>
    %9 = tpu.matmul %0, %8, %cst_4 {dimension_numbers = #tpu.dot_dimension_numbers<[1], [0], [0], [1], [0, 0, 1, 1], [], []>} : vector<8x8xf32>, vector<8x256xf32>, vector<8x256xf32> -> vector<8x256xf32>
    %cst_5 = arith.constant 1.000000e+00 : f32
    %10 = vector.broadcast %cst_5 : f32 to vector<8x256xf32>
    %11 = arith.addf %9, %10 : vector<8x256xf32>
    %12 = math.rsqrt %11 : vector<8x256xf32>
    %13 = math.sqrt %12 : vector<8x256xf32>
    %14 = arith.mulf %12, %13 : vector<8x256xf32>
    %15 = arith.mulf %7, %14 : vector<8x256xf32>
    %c0_6 = arith.constant 0 : index
    %c0_7 = arith.constant 0 : index
    %c0_8 = arith.constant 0 : index
    %16 = vector.load %arg4[%c0_6, %c0_7, %c0_8] : memref<1x8x256xf32, #tpu.memory_space<vmem>>, vector<1x8x256xf32>
    %17 = vector.shape_cast %16 : vector<1x8x256xf32> to vector<8x256xf32>
    %18 = vector.shape_cast %15 : vector<8x256xf32> to vector<1x8x256xf32>
    tpu.vector_store %arg4[%c0_6, %c0_7, %c0_8], %18 {strides = array<i32>} : memref<1x8x256xf32, #tpu.memory_space<vmem>>, vector<1x8x256xf32>,
    return
  }
  func.func @transform_0(%arg0: i32, %arg1: i32) -> (i32, i32) {
    %c0_i32 = arith.constant 0 : i32
    %c0_i32_0 = arith.constant 0 : i32
    %c0_i32_1 = arith.constant 0 : i32
    return %c0_i32, %c0_i32_0 : i32, i32
  }
  func.func @transform_1(%arg0: i32, %arg1: i32) -> (i32, i32, i32) {
    %c0_i32 = arith.constant 0 : i32
    %c0_i32_0 = arith.constant 0 : i32
    return %arg0, %c0_i32, %arg1 : i32, i32, i32
  }
  func.func @transform_2(%arg0: i32, %arg1: i32) -> (i32, i32, i32) {
    %c0_i32 = arith.constant 0 : i32
    %c0_i32_0 = arith.constant 0 : i32
    return %arg0, %c0_i32, %arg1 : i32, i32, i32
  }
}

</mosaic_0001>

<llo_original>
// kernel: tpu_custom_call.1
$region0: #{tpu_custom_call.1}
  #allocation0 [shape = 'u32[]', space=smem, size = 0x4, offset = 0x4, fixed_abs, tag = 'smem constant byte address 0x4 - core index']
  #allocation1 [shape = 'u32[144,128]{1,0:T(1,128)}', space=vmem, size = 0x12000, scoped, tag = 'internal scratch']
  %s0 = inlined_call_operand.hbm [shape: f32[8,8], index: 0, kind: input, shape index: {}]
  %s1 = inlined_call_operand.hbm [shape: f32[2,4,256], index: 1, kind: input, shape index: {}]
  %s2 = inlined_call_operand.hbm [shape: f32[2,4,256], index: 2, kind: output, shape index: {}]
  %s3 = sld [smem:[#allocation0]]
  $region49: #{tpu_custom_call.1} parent=0
    _
  %s5 = ssub.s32 1, %s3
  %s6 = scalar_select 0, %s5, %s3
  $region1: #{tpu_custom_call.1} parent=0
    #allocation2 [shape = 'u8[4096]{0}', space=vmem, size = 0x1000, scoped, tag = 'input window, operand 0, single buffered']
    #allocation3 [shape = 's32[2]{0}', space=sflag, size = 0x8, scoped, tag = 'scoped memory for tpu_custom_call.1']
    #allocation4 [shape = 's32[2]{0}', space=sflag, size = 0x8, scoped, tag = 'scoped memory for tpu_custom_call.1']
    #allocation5 [shape = 'u8[16384]{0}', space=vmem, size = 0x4000, scoped, tag = 'input window, operand 1']
    #allocation6 [shape = 's32[2]{0}', space=sflag, size = 0x8, scoped, tag = 'scoped memory for tpu_custom_call.1']
    #allocation7 [shape = 'u8[16384]{0}', space=vmem, size = 0x4000, scoped, tag = 'output window, operand 0']
    %7 = vsyncpa [#allocation3], 0
    %8 = vsyncpa [#allocation6], 0
    %s9 = scalar_lea.sflag [#allocation6], 1
    %10 = vsyncpa %s9, 0
    %11 = vsyncpa [#allocation4], 0
    %s12 = scalar_lea.sflag [#allocation4], 1
    %13 = vsyncpa %s12, 0
    loop: start=0, step=1, limit=4
    $region2: #{tpu_custom_call.1} parent=1 // loop_pre_header
      _
    $region3: #{tpu_custom_call.1} parent=1 // loop_header
      %s15 = sphi 0, %s19
      %p16 = scmp.ge.s32.totalorder %s15, 4
      %s22 = sphi 0, %s34
      %s23 = sphi 0, %s30
      %s24 = sphi 0, %s22
      %s25 = sphi 0, %s23
      %s26 = sphi 0, %s24
      %s27 = sphi 0, %s25
      %s35 = sphi 0, %s35
      %s37 = sphi 0, %s35
      %s38 = sphi 0, %s37
      %s52 = sphi 0, %s38
      %s60 = sphi 0, %s62
      %s63 = sphi 0, %s60
      %s64 = sphi 0, %s63
      %s80 = sphi 0, %s64
      %s88 = sphi 0, %s90
      %s91 = sphi 0, %s88
      %s92 = sphi 0, %s91
      %s108 = sphi 0, %s92
    $region4: #{tpu_custom_call.1} parent=1 // loop_header_branch
      %18 = sbr.rel (%p16) target = $region8
    $region5: #{tpu_custom_call.1} parent=1 // loop_body
      %s20 = ssub.s32 %s15, 1
      %s21 = ssub.s32 %s15, 2
      %s28 = sadd.s32 1, %s23
      %p29 = scmp.ge.s32.totalorder %s28, 1
      %s30 = scalar_select %p29, 0, %s28
      %s31 = sadd.s32 1, %s22
      %s32 = scalar_select %p29, %s31, %s22
      %p33 = scmp.ge.s32.totalorder %s32, 2
      %s34 = scalar_select %p33, 0, %s32
      %s36 = sadd.s32 %s35, 1
      %p39 = scmp.eq.s32.totalorder %s15, 1
      %p40 = scmp.ne.s32.totalorder %s35, %s37
      %p41 = scmp.eq.s32.totalorder %s15, 0
      %p42 = por %p40, %p41
      %p43 = scmp.ne.s32.totalorder %s35, %s37
      %p44 = scmp.eq.s32.totalorder %s20, 1
      %p45 = por %p43, %p44
      %p46 = scmp.ne.s32.totalorder %s37, %s38
      %p47 = scmp.eq.s32.totalorder %s20, 0
      %p48 = por %p46, %p47
      %p49 = scmp.ne.s32.totalorder %s37, %s38
      %p50 = scmp.eq.s32.totalorder %s21, 1
      %p51 = por %p49, %p50
      %p53 = scmp.ne.s32.totalorder %s38, %s52
      %p54 = scmp.eq.s32.totalorder %s21, 0
      %p55 = por %p53, %p54
      %s56 = ssub.s32 %s22, %s34
      %s57 = ssub.s32 %s23, %s30
      %s58 = sor.u32 %s56, %s57
      %p59 = scmp.eq.s32.totalorder %s58, 0
      %s61 = sadd.s32 %s60, 1
      %s62 = scalar_select %p59, %s60, %s61
      %p65 = pneg %p59
      %p66 = scmp.eq.s32.totalorder %s15, 1
      %p67 = por %p65, %p66
      %p68 = scmp.ne.s32.totalorder %s60, %s63
      %p69 = scmp.eq.s32.totalorder %s15, 0
      %p70 = por %p68, %p69
      %p71 = scmp.ne.s32.totalorder %s60, %s63
      %p72 = scmp.eq.s32.totalorder %s20, 1
      %p73 = por %p71, %p72
      %p74 = scmp.ne.s32.totalorder %s63, %s64
      %p75 = scmp.eq.s32.totalorder %s20, 0
      %p76 = por %p74, %p75
      %p77 = scmp.ne.s32.totalorder %s63, %s64
      %p78 = scmp.eq.s32.totalorder %s21, 1
      %p79 = por %p77, %p78
      %p81 = scmp.ne.s32.totalorder %s64, %s80
      %p82 = scmp.eq.s32.totalorder %s21, 0
      %p83 = por %p81, %p82
      %s84 = ssub.s32 %s22, %s34
      %s85 = ssub.s32 %s23, %s30
      %s86 = sor.u32 %s84, %s85
      %p87 = scmp.eq.s32.totalorder %s86, 0
      %s89 = sadd.s32 %s88, 1
      %s90 = scalar_select %p87, %s88, %s89
      %p93 = pneg %p87
      %p94 = scmp.eq.s32.totalorder %s15, 1
      %p95 = por %p93, %p94
      %p96 = scmp.ne.s32.totalorder %s88, %s91
      %p97 = scmp.eq.s32.totalorder %s15, 0
      %p98 = por %p96, %p97
      %p99 = scmp.ne.s32.totalorder %s88, %s91
      %p100 = scmp.eq.s32.totalorder %s20, 1
      %p101 = por %p99, %p100
      %p102 = scmp.ne.s32.totalorder %s91, %s92
      %p103 = scmp.eq.s32.totalorder %s20, 0
      %p104 = por %p102, %p103
      %p105 = scmp.ne.s32.totalorder %s91, %s92
      %p106 = scmp.eq.s32.totalorder %s21, 1
      %p107 = por %p105, %p106
      %p109 = scmp.ne.s32.totalorder %s92, %s108
      %p110 = scmp.eq.s32.totalorder %s21, 0
      %p111 = por %p109, %p110
      %p112 = scmp.le.s32.totalorder 1, %s15
      %p113 = scmp.lt.s32.totalorder %s15, 3
      %p114 = pnand %p112, %p113
      %p115 = pneg %p114
      // Predicated region
      $region9: #{tpu_custom_call.1} parent=5 // pred_check
        _
      $region10: #{tpu_custom_call.1} parent=5 // pred_check_branch
        %117 = sbr.rel (%p114) target = $region12
      $region11: #{tpu_custom_call.1} parent=5 // pred_region
        %s118 = ssub.s32 %s15, 1
        // Predicated region
        $region13: #{tpu_custom_call.1} parent=11 // pred_check
          %p119 = pneg %p48
        $region14: #{tpu_custom_call.1} parent=11 // pred_check_branch
          %121 = sbr.rel (%p119) target = $region16
        $region15: #{tpu_custom_call.1} parent=11 // pred_region
          %s123 = ssub.s32 128, 128
          %124 = vsyncadd [#allocation3], %s123
          %s126 = sshll.u32 [#allocation2], 4
          %s127 = int_to_ptr.vmem [resolvable:$true] %s126
          %129 = dma.hbm_to_vmem [thread:$0]  %s0, 128, %s127, [#allocation3]
        $region16: #{tpu_custom_call.1} parent=11 // pred_fallthru
          _
      $region12: #{tpu_custom_call.1} parent=5 // pred_fallthru
        _
      %p130 = scmp.lt.s32.totalorder %s15, 2
      // Predicated region
      $region17: #{tpu_custom_call.1} parent=5 // pred_check
        %p131 = pneg %p130
      $region18: #{tpu_custom_call.1} parent=5 // pred_check_branch
        %133 = sbr.rel (%p131) target = $region20
      $region19: #{tpu_custom_call.1} parent=5 // pred_region
        // Predicated region
        $region21: #{tpu_custom_call.1} parent=19 // pred_check
          %p134 = pneg %p70
        $region22: #{tpu_custom_call.1} parent=19 // pred_check_branch
          %136 = sbr.rel (%p134) target = $region24
        $region23: #{tpu_custom_call.1} parent=19 // pred_region
          %s137 = sand.u32 %s60, 1
          %s138 = scalar_lea.sflag [#allocation6], %s137
          %s139 = sand.u32 %s60, 1
          %s140 = smul.addr %s139, 16
          %s141 = scalar_lea.vmem [#allocation5], %s140
          %s142 = smul.u32 2, %s23
          %s144 = ssub.s32 256, 128
          %145 = vsyncadd %s138, %s144
          %s146 = smul.addr %s22, 2
          %s147 = sadd.s32 %s142, %s146
          %s148 = smul.addr %s147, 64
          %s149 = scalar_lea.hbm %s1, %s148
          %s150 = sshll.u32 %s141, 4
          %s151 = int_to_ptr.vmem [resolvable:$true] %s150
          %156 = dma.hbm_to_vmem [thread:$0]  %s149, 128, %s151, %s138, 128, 128, 8
        $region24: #{tpu_custom_call.1} parent=19 // pred_fallthru
          _
      $region20: #{tpu_custom_call.1} parent=5 // pred_fallthru
        _
      %p157 = scmp.le.s32.totalorder 1, %s15
      %p158 = scmp.lt.s32.totalorder %s15, 3
      %p159 = pnand %p157, %p158
      %p160 = pneg %p159
      // Predicated region
      $region25: #{tpu_custom_call.1} parent=5 // pred_check
        _
      $region26: #{tpu_custom_call.1} parent=5 // pred_check_branch
        %162 = sbr.rel (%p159) target = $region28
      $region27: #{tpu_custom_call.1} parent=5 // pred_region
        %s163 = ssub.s32 %s15, 1
        // Predicated region
        $region29: #{tpu_custom_call.1} parent=27 // pred_check
          %p164 = pneg %p48
        $region30: #{tpu_custom_call.1} parent=27 // pred_check_branch
          %166 = sbr.rel (%p164) target = $region32
        $region31: #{tpu_custom_call.1} parent=27 // pred_region
          %167 = dma.done [#allocation3], 128
        $region32: #{tpu_custom_call.1} parent=27 // pred_fallthru
          _
        %s168 = sand.u32 %s63, 1
        %s169 = scalar_lea.sflag [#allocation6], %s168
        %s170 = sand.u32 %s63, 1
        %s171 = smul.addr %s170, 16
        %s172 = scalar_lea.vmem [#allocation5], %s171
        // Predicated region
        $region33: #{tpu_custom_call.1} parent=27 // pred_check
          %p173 = pneg %p76
        $region34: #{tpu_custom_call.1} parent=27 // pred_check_branch
          %175 = sbr.rel (%p173) target = $region36
        $region35: #{tpu_custom_call.1} parent=27 // pred_region
          %176 = dma.done %s169, 256
        $region36: #{tpu_custom_call.1} parent=27 // pred_fallthru
          _
        %p177 = pneg %p48
        %p178 = pneg %p45
        %s179 = sand.u32 %s63, 1
        %s180 = scalar_lea.sflag [#allocation6], %s179
        %s181 = sand.u32 %s63, 1
        %s182 = smul.addr %s181, 16
        %s183 = scalar_lea.vmem [#allocation5], %s182
        %p184 = pneg %p76
        %p185 = pneg %p73
        %p186 = pneg %p104
        %p187 = pneg %p101
        %s188 = sand.u32 %s91, 1
        %s189 = scalar_lea.sflag [#allocation4], %s188
        %s190 = sand.u32 %s91, 1
        %s191 = smul.addr %s190, 16
        %s192 = scalar_lea.vmem [#allocation7], %s191
        %s193 = smul.u32 2, %s25
        %s194 = smul.u32 2, %s25
        %v195 = vld [vmem:[#allocation2] sm:$0xff]
        %v196 = vlaneseq
        %v197 = vshrl.u32 %v196, 7
        %vm198 = vcmp.lt.s32.totalorder %v197, 4
        %v199 = vld [vmem:[%s172] sm:$0xff]
        %v200 = vld [vmem:[%s172 + $0x8] sm:$0xff]
        %v203 = vcombine.low %v199, %v200
        %v204 = vcombine.high %v199, %v200
        %v207 = vsel %vm198, %v203, 0.0
        %v208 = vsel %vm198, %v204, 0.0
        %v209 = vmul.f32 %v207, %v207
        %v210 = vmul.f32 %v208, %v208
        %vm211 = vcmask 64512
        %v213 = vsel %vm211, %v195, 0
        %215 = vmatprep.subr.mxu0 0.0
        %216 = vmatpush1.msra.mxu0 0.0
        %217 = vmatprep.subr.mxu0 0.0
        %218 = vmatpush1.msra.mxu0 0.0
        %219 = vmatprep.subr.mxu0 0.0
        %220 = vmatpush1.msra.mxu0 0.0
        %221 = vmatprep.subr.mxu0 0.0
        %222 = vmatpush1.msra.mxu0 0.0
        %223 = vmatprep.subr.mxu0 0.0
        %224 = vmatpush1.msra.mxu0 0.0
        %225 = vmatprep.subr.mxu0 0.0
        %226 = vmatpush1.msra.mxu0 0.0
        %227 = vmatprep.subr.mxu0 0.0
        %228 = vmatpush1.msra.mxu0 0.0
        %229 = vmatprep.subr.mxu0 0.0
        %230 = vmatpush1.msra.mxu0 0.0
        %231 = vmatprep.subr.mxu0 0.0
        %232 = vmatpush1.msra.mxu0 0.0
        %233 = vmatprep.subr.mxu0 0.0
        %234 = vmatpush1.msra.mxu0 0.0
        %235 = vmatprep.subr.mxu0 0.0
        %236 = vmatpush1.msra.mxu0 0.0
        %237 = vmatprep.subr.mxu0 0.0
        %238 = vmatpush1.msra.mxu0 0.0
        %239 = vmatprep.subr.mxu0 0.0
        %240 = vmatpush1.msra.mxu0 0.0
        %241 = vmatprep.subr.mxu0 0.0
        %242 = vmatpush1.msra.mxu0 0.0
        %243 = vmatprep.subr.mxu0 0.0
        %244 = vmatpush1.msra.mxu0 0.0
        %245 = vmatprep.subr.mxu0 %v210
        %246 = vmatpush1.msra.mxu0 %v209
        %247 = vmatprep.subr.mxu0 0.0
        %248 = vmatpush2.msra.mxu0 0.0
        %249 = vmatprep.subr.mxu0 0.0
        %250 = vmatpush2.msra.mxu0 0.0
        %251 = vmatprep.subr.mxu0 0.0
        %252 = vmatpush2.msra.mxu0 0.0
        %253 = vmatprep.subr.mxu0 0.0
        %254 = vmatpush2.msra.mxu0 0.0
        %255 = vmatprep.subr.mxu0 0.0
        %256 = vmatpush2.msra.mxu0 0.0
        %257 = vmatprep.subr.mxu0 0.0
        %258 = vmatpush2.msra.mxu0 0.0
        %259 = vmatprep.subr.mxu0 0.0
        %260 = vmatpush2.msra.mxu0 0.0
        %261 = vmatprep.subr.mxu0 0.0
        %262 = vmatpush2.msra.mxu0 0.0
        %263 = vmatprep.subr.mxu0 0.0
        %264 = vmatpush2.msra.mxu0 0.0
        %265 = vmatprep.subr.mxu0 0.0
        %266 = vmatpush2.msra.mxu0 0.0
        %267 = vmatprep.subr.mxu0 0.0
        %268 = vmatpush2.msra.mxu0 0.0
        %269 = vmatprep.subr.mxu0 0.0
        %270 = vmatpush2.msra.mxu0 0.0
        %271 = vmatprep.subr.mxu0 0.0
        %272 = vmatpush2.msra.mxu0 0.0
        %273 = vmatprep.subr.mxu0 0.0
        %274 = vmatpush2.msra.mxu0 0.0
        %275 = vmatprep.subr.mxu0 0.0
        %276 = vmatpush2.msra.mxu0 0.0
        %277 = vmatprep.subr.mxu0 0.0
        %278 = vmatpush2.msra.mxu0 0.0
        %279 = vmatprep.mubr.f32.mxu0 0.0
        %280 = vmatmul.mubr.f32.gmra.mxu0 %v213
        %v281 = vpop.f32.mrf.mxu0
        %v282 = vadd.f32 1.0, %v281
        %v283 = vpop.f32.mrf.mxu0
        %v284 = vadd.f32 1.0, %v283
        %285 = vdwg.mxu0
        %v286 = vrsqrt.pop %v282
        %v287 = vrsqrt.pop %v284
        %v288 = vrsqrt.pop %v286
        %v289 = vmul.f32 %v286, %v288
        %vm290 = vcmp.eq.f32.partialorder %v286, inf
        %v291 = vsel %vm290, %v286, %v289
        %vm292 = vcmp.eq.f32.partialorder %v286, 0.0
        %v293 = vand.u32 %v286, 2147483648
        %v294 = vsel %vm292, %v293, %v291
        %v295 = vrsqrt.pop %v287
        %v296 = vmul.f32 %v287, %v295
        %vm297 = vcmp.eq.f32.partialorder %v287, inf
        %v298 = vsel %vm297, %v287, %v296
        %vm299 = vcmp.eq.f32.partialorder %v287, 0.0
        %v300 = vand.u32 %v287, 2147483648
        %v301 = vsel %vm299, %v300, %v298
        %v302 = vmul.f32 %v286, %v294
        %v303 = vmul.f32 %v287, %v301
        %v304 = vmul.f32 %v207, %v302
        %v305 = vmul.f32 %v208, %v303
        %v308 = vcombine.low %v304, %v305
        %v309 = vcombine.high %v304, %v305
        %312 = vst [vmem:[%s192] sm:$0xff] %v308
        %313 = vst [vmem:[%s192 + $0x8] sm:$0xff] %v309
        %s314 = sand.u32 %s91, 1
        %s315 = scalar_lea.sflag [#allocation4], %s314
        %s316 = sand.u32 %s91, 1
        %s317 = smul.addr %s316, 16
        %s318 = scalar_lea.vmem [#allocation7], %s317
        // Predicated region
        $region37: #{tpu_custom_call.1} parent=27 // pred_check
          %p319 = pneg %p101
        $region38: #{tpu_custom_call.1} parent=27 // pred_check_branch
          %321 = sbr.rel (%p319) target = $region40
        $region39: #{tpu_custom_call.1} parent=27 // pred_region
          %s322 = smul.u32 2, %s25
          %s324 = ssub.s32 256, 128
          %325 = vsyncadd %s315, %s324
          %s326 = smul.addr %s24, 2
          %s327 = sadd.s32 %s322, %s326
          %s328 = smul.addr %s327, 64
          %s329 = scalar_lea.hbm %s2, %s328
          %s330 = sshll.u32 %s318, 4
          %s331 = int_to_ptr.vmem [resolvable:$true] %s330
          %336 = dma.vmem_to_hbm [thread:$0]  %s331, 128, %s329, %s315, 128, 128, 8
        $region40: #{tpu_custom_call.1} parent=27 // pred_fallthru
          _
      $region28: #{tpu_custom_call.1} parent=5 // pred_fallthru
        _
      %p337 = scmp.le.s32.totalorder 2, %s15
      // Predicated region
      $region41: #{tpu_custom_call.1} parent=5 // pred_check
        %p338 = pneg %p337
      $region42: #{tpu_custom_call.1} parent=5 // pred_check_branch
        %340 = sbr.rel (%p338) target = $region44
      $region43: #{tpu_custom_call.1} parent=5 // pred_region
        %s341 = ssub.s32 %s15, 2
        // Predicated region
        $region45: #{tpu_custom_call.1} parent=43 // pred_check
          %p342 = pneg %p107
        $region46: #{tpu_custom_call.1} parent=43 // pred_check_branch
          %344 = sbr.rel (%p342) target = $region48
        $region47: #{tpu_custom_call.1} parent=43 // pred_region
          %s345 = sand.u32 %s92, 1
          %s346 = scalar_lea.sflag [#allocation4], %s345
          %s347 = sand.u32 %s92, 1
          %s348 = smul.addr %s347, 16
          %s349 = scalar_lea.vmem [#allocation7], %s348
          %350 = dma.done %s346, 256
        $region48: #{tpu_custom_call.1} parent=43 // pred_fallthru
          _
      $region44: #{tpu_custom_call.1} parent=5 // pred_fallthru
        _
    $region6: #{tpu_custom_call.1} parent=1 // loop_footer
      %s19 = sadd.s32 1, %s15
    $region7: #{tpu_custom_call.1} parent=1 // loop_footer_branch
      %14 = sbr.rel target = $region3
    $region8: #{tpu_custom_call.1} parent=1 // loop_exit
      _
    %351 = vsyncpa [#allocation3], 1
    %s352 = scalar_lea.sflag [#allocation3], 1
    %353 = vsyncpa %s352, 1
    %354 = vsyncpa [#allocation6], 1
    %s355 = scalar_lea.sflag [#allocation6], 1
    %356 = vsyncpa %s355, 1
    %357 = vsyncpa [#allocation4], 1
    %s358 = scalar_lea.sflag [#allocation4], 1
    %359 = vsyncpa %s358, 1

</llo_original>
